<compile_context>
chip_gen: v5e
topology: v5e:2x2
jax: 0.10.0
libtpu: 0.0.40
codegen_flags: <defaults>
</compile_context>

<pallas_src>
import functools

import jax
import jax.numpy as jnp
from jax.experimental import pallas as pl
from jax.experimental.pallas import tpu as pltpu

NORM_EPS = 1e-6


def _round_up(a: int, b: int) -> int:
    return ((a + b - 1) // b) * b


def _round_down(a: int, b: int) -> int:
    return (a // b) * b


def _vmem_capacity_bytes() -> int:
    try:
        return int(pltpu.get_tpu_info().vmem_capacity_bytes)
    except Exception:
        return 64 << 20  # conservative fallback (v7x per-TensorCore VMEM)


def _layernorm_and_store(h, g_ref, beta_ref, o_ref):
    """LayerNorm over the lane axis (f32, two-pass stats) and store."""
    d = h.shape[-1]
    inv_d = 1.0 / d
    mean = jnp.sum(h, axis=-1, keepdims=True) * inv_d
    c = h - mean                                       # needed for the output anyway
    var = jnp.sum(c * c, axis=-1, keepdims=True) * inv_d
    inv = jax.lax.rsqrt(var + NORM_EPS)
    o_ref[...] = (c * inv * g_ref[...] + beta_ref[...]).astype(o_ref.dtype)


def _resident_kernel(x_ref, w_ref, b_ref, g_ref, beta_ref, o_ref):
    # x_ref: (tm, D) in the model dtype; w_ref: (D, D) resident, compute dtype.
    x = x_ref[...]
    # Inner Linear on the MXU (f32 accumulation); cast to the compute dtype on the
    # VPU in-kernel (hidden under the MXU), residual added back in f32.
    h = jnp.dot(x.astype(w_ref.dtype), w_ref[...], preferred_element_type=jnp.float32)
    h = h + b_ref[...] + x.astype(jnp.float32)
    _layernorm_and_store(h, g_ref, beta_ref, o_ref)


def _coltile_kernel(x_ref, w_ref, b_ref, g_ref, beta_ref, o_ref, h_ref):
    # Grid: (row tiles "parallel", column tiles "arbitrary").
    # x_ref: (tm, D); w_ref: (D, tn); h_ref: (tm, D) f32 VMEM scratch.
    j = pl.program_id(1)
    tn = w_ref.shape[-1]
    h_col = jnp.dot(x_ref[...].astype(w_ref.dtype), w_ref[...],
                    preferred_element_type=jnp.float32) + b_ref[...]
    col0 = pl.multiple_of(j * tn, tn)
    h_ref[:, pl.ds(col0, tn)] = h_col

    @pl.when(j == pl.num_programs(1) - 1)
    def _():
        # Residual in f32, then full-row LayerNorm, single writeback per row tile.
        h = h_ref[...] + x_ref[...].astype(jnp.float32)
        _layernorm_and_store(h, g_ref, beta_ref, o_ref)


@functools.partial(
    jax.jit, static_argnames=("tm", "tn", "compute_dtype", "force_column_tiling"))
def residual_norm(x, w, b, gamma, beta, *, tm=None, tn=None,
                  compute_dtype=None, force_column_tiling=False):
    """out = LayerNorm(x + (x @ w + b)) with LayerNorm weight/bias gamma/beta.

    x: (B, S, D). `w` is stored already transposed so the Linear is x @ w + b.
    Keep D a multiple of 128 (lane-dense); for large D prefer
    compute_dtype=jnp.bfloat16 (single MXU pass, half the resident-weight VMEM).
    """
    B, S, D = x.shape
    M = B * S
    out_dtype = x.dtype
    if compute_dtype is None:
        compute_dtype = x.dtype
    compute_dtype = jnp.dtype(compute_dtype)

    xbytes = jnp.dtype(x.dtype).itemsize
    obytes = jnp.dtype(out_dtype).itemsize
    cbytes = compute_dtype.itemsize

    # Sublane packing of the row (second-to-last) block dim for x / out tiles.
    pack = max(8, 32 // min(xbytes, obytes))
    M_al = _round_up(M, pack)

    xf = x.reshape(M, D)                         # no copy, no dtype cast (cast in-kernel)
    w_c = w.astype(compute_dtype)
    b2 = b.reshape(1, D).astype(jnp.float32)
    g2 = gamma.reshape(1, D).astype(jnp.float32)
    be2 = beta.reshape(1, D).astype(jnp.float32)

    cap = _vmem_capacity_bytes()                 # 128 MiB v5e/v6e, 64 MiB/TC v7x
    budget = int(cap * 0.8)                      # leave headroom for Mosaic internals

    # In-kernel f32 temporaries per row (h, centered, residual cast, pre-cast out)
    # plus the VPU cast of the x tile when compute dtype != model dtype.
    tmp_per_row = 4 * D * 4 + (D * cbytes if compute_dtype != x.dtype else 0)

    # ---- resident-weight plan footprint --------------------------------------
    fixed_res = D * D * cbytes + 3 * D * 4               # W single-buffered + b/g/beta
    per_row_res = 2 * D * xbytes + 2 * D * obytes + tmp_per_row

    # ---- column-tiled plan footprint ------------------------------------------
    if tn is None:
        tn_eff = D
        for cand in (1024, 512, 256, 128):
            if D % cand == 0:
                tn_eff = cand
                break
    else:
        tn_eff = int(tn)
    if D % tn_eff != 0:
        tn_eff = D
    fixed_col = 2 * D * tn_eff * cbytes + 2 * tn_eff * 4 + 2 * D * 4
    per_row_col = (2 * D * xbytes + 2 * D * obytes
                   + D * 4                # h scratch (f32, full row width)
                   + tn_eff * 4           # h_col working value
                   + tmp_per_row)

    def _pick_tm(fixed_bytes, per_row_bytes):
        if tm is not None:
            t = _round_up(max(int(tm), pack), pack)
        else:
            # ~3 MiB x tiles amortize the ~0.35 us per-grid-step overhead at small D
            # without blowing VMEM at large D.
            t = _round_up(max(1, (3 << 20) // max(1, D * xbytes)), pack)
            t = max(256, min(t, 2048))
        t = min(t, M_al)
        if tm is None:
            # v7x megacore: give both TensorCores at least one row tile, but keep a
            # >=256-row LHS for the 256-wide MXU (v6e/v7x) unless M itself is small.
            half = _round_up(-(-M // 2), pack)
            if half >= 256 or M_al < 256:
                t = min(t, max(half, pack))
        # Fit the VMEM budget.
        avail = max(budget - fixed_bytes, 0)
        t_fit = _round_down(avail // max(per_row_bytes, 1), pack)
        return max(min(t, t_fit), 0)

    def _vmem_limit(need_bytes):
        return int(min(int(cap * 0.9),
                       max(int(need_bytes * 1.3) + (2 << 20), 32 << 20)))

    tm_res = _pick_tm(fixed_res, per_row_res)
    min_rows = max(min(256, M_al), pack)
    use_resident = ((not force_column_tiling)
                    and tm_res >= pack
                    and fixed_res + per_row_res * min_rows <= budget)

    if use_resident:
        tm_eff = tm_res
        need = fixed_res + per_row_res * tm_eff
        out = pl.pallas_call(
            _resident_kernel,
            out_shape=jax.ShapeDtypeStruct((M, D), out_dtype),
            grid_spec=pltpu.PrefetchScalarGridSpec(
                num_scalar_prefetch=0,
                grid=(pl.cdiv(M, tm_eff),),
                in_specs=[
                    pl.BlockSpec((tm_eff, D), lambda i: (i, 0)),          # x tile
                    # Grid-invariant operands: single-buffered (fetched once).
                    pl.BlockSpec((D, D), lambda i: (0, 0),
                                 pipeline_mode=pl.Buffered(1)),           # weight
                    pl.BlockSpec((1, D), lambda i: (0, 0),
                                 pipeline_mode=pl.Buffered(1)),           # bias
                    pl.BlockSpec((1, D), lambda i: (0, 0),
                                 pipeline_mode=pl.Buffered(1)),           # gamma
                    pl.BlockSpec((1, D), lambda i: (0, 0),
                                 pipeline_mode=pl.Buffered(1)),           # beta
                ],
                out_specs=pl.BlockSpec((tm_eff, D), lambda i: (i, 0)),
            ),
            compiler_params=pltpu.CompilerParams(
                dimension_semantics=("parallel",),
                vmem_limit_bytes=_vmem_limit(need),
            ),
        )(xf, w_c, b2, g2, be2)
    else:
        tm_eff = max(_pick_tm(fixed_col, per_row_col), pack)
        need = fixed_col + per_row_col * tm_eff
        out = pl.pallas_call(
            _coltile_kernel,
            out_shape=jax.ShapeDtypeStruct((M, D), out_dtype),
            grid_spec=pltpu.PrefetchScalarGridSpec(
                num_scalar_prefetch=0,
                grid=(pl.cdiv(M, tm_eff), D // tn_eff),
                in_specs=[
                    pl.BlockSpec((tm_eff, D), lambda i, j: (i, 0)),       # x tile
                    pl.BlockSpec((D, tn_eff), lambda i, j: (0, j)),       # W columns
                    pl.BlockSpec((1, tn_eff), lambda i, j: (0, j)),       # bias columns
                    pl.BlockSpec((1, D), lambda i, j: (0, 0),
                                 pipeline_mode=pl.Buffered(1)),           # gamma
                    pl.BlockSpec((1, D), lambda i, j: (0, 0),
                                 pipeline_mode=pl.Buffered(1)),           # beta
                ],
                out_specs=pl.BlockSpec((tm_eff, D), lambda i, j: (i, 0)),
                scratch_shapes=[pltpu.VMEM((tm_eff, D), jnp.float32)],    # h accumulator
            ),
            compiler_params=pltpu.CompilerParams(
                dimension_semantics=("parallel", "arbitrary"),
                vmem_limit_bytes=_vmem_limit(need),
            ),
        )(xf, w_c, b2, g2, be2)

    return out.reshape(B, S, D)


def _reference(x, w, b, gamma, beta):
    h = x + (jnp.einsum("bsd,de->bse", x, w) + b)
    mean = jnp.mean(h, axis=-1, keepdims=True)
    var = jnp.mean((h - mean) ** 2, axis=-1, keepdims=True)
    return (h - mean) / jnp.sqrt(var + NORM_EPS) * gamma + beta


if __name__ == "__main__":
    key = jax.random.PRNGKey(0)
    kx, kw, kb, kx2, kw2, kb2 = jax.random.split(key, 6)

    # D a multiple of 128 keeps the lane axis dense (unmasked stores, full MXU width).
    B, S, D = 2, 8, 128
    x = jax.random.normal(kx, (B, S, D), dtype=jnp.float32)

    # Deterministic parameter init (synthetic, not a checkpoint load).
    # Linear(dim, dim): weight stored already transposed so y = x @ w + b.
    bound = 1.0 / (D ** 0.5)
    w = jax.random.uniform(kw, (D, D), minval=-bound, maxval=bound, dtype=jnp.float32)
    b = jax.random.uniform(kb, (D,), minval=-bound, maxval=bound, dtype=jnp.float32)
    # nn.LayerNorm defaults: weight=1, bias=0
    gamma = jnp.ones((D,), dtype=jnp.float32)
    beta = jnp.zeros((D,), dtype=jnp.float32)

    ref = _reference(x, w, b, gamma, beta)

    # 1) f32 resident-weight path: tight correctness check.
    out = jax.block_until_ready(residual_norm(x, w, b, gamma, beta))
    assert out.shape == (B, S, D)
    assert jnp.allclose(out, ref, atol=1e-4, rtol=1e-4), "f32 path mismatch vs reference"

    # 2) bf16 MXU path (residual + LayerNorm stay f32): loose sanity check.
    out_bf = jax.block_until_ready(
        residual_norm(x, w, b, gamma, beta, compute_dtype=jnp.bfloat16))
    assert float(jnp.max(jnp.abs(out_bf.astype(jnp.float32) - ref))) < 0.25, \
        "bf16 path mismatch vs reference"

    # 3) Ragged row count (no wrapper-side pad/slice; Pallas clamps the tail block).
    B2, S2 = 3, 7
    x2 = jax.random.normal(kx2, (B2, S2, D), dtype=jnp.float32)
    out2 = jax.block_until_ready(residual_norm(x2, w, b, gamma, beta, tm=16))
    ref2 = _reference(x2, w, b, gamma, beta)
    assert jnp.allclose(out2, ref2, atol=1e-4, rtol=1e-4), "ragged path mismatch vs reference"

    # 4) Column-tiled (two-phase LayerNorm) path, forced at small shape to exercise it.
    D3 = 256
    x3 = jax.random.normal(kx2, (2, 8, D3), dtype=jnp.float32)
    bound3 = 1.0 / (D3 ** 0.5)
    w3 = jax.random.uniform(kw2, (D3, D3), minval=-bound3, maxval=bound3, dtype=jnp.float32)
    b3 = jax.random.uniform(kb2, (D3,), minval=-bound3, maxval=bound3, dtype=jnp.float32)
    g3 = jnp.ones((D3,), dtype=jnp.float32)
    be3 = jnp.zeros((D3,), dtype=jnp.float32)
    out3 = jax.block_until_ready(
        residual_norm(x3, w3, b3, g3, be3, force_column_tiling=True, tn=128))
    ref3 = _reference(x3, w3, b3, g3, be3)
    assert jnp.allclose(out3, ref3, atol=1e-4, rtol=1e-4), "column-tiled path mismatch vs reference"

    print("KERNEL_OK")
</pallas_src>

<mosaic_0001>
module attributes {stable_mosaic.version = 11 : i64} {
  func.func @_resident_kernel(%arg0: i32, %arg1: memref<8x128xf32, #tpu.memory_space<vmem>>, %arg2: memref<128x128xf32, #tpu.memory_space<vmem>>, %arg3: memref<1x128xf32, #tpu.memory_space<vmem>>, %arg4: memref<1x128xf32, #tpu.memory_space<vmem>>, %arg5: memref<1x128xf32, #tpu.memory_space<vmem>>, %arg6: memref<8x128xf32, #tpu.memory_space<vmem>>) attributes {dimension_semantics = [#tpu.dimension_semantics<parallel>], iteration_bounds = array<i64: 2>, scalar_prefetch = 0 : i64, scratch_operands = 0 : i64, tpu.core_type = #tpu.core_type<tc>, window_params = [{transform_indices = @transform_0, window_bounds = array<i64: 8, 128>}, {pipeline_mode = #tpu.pipeline_mode<synchronous>, transform_indices = @transform_1, window_bounds = array<i64: 128, 128>}, {pipeline_mode = #tpu.pipeline_mode<synchronous>, transform_indices = @transform_2, window_bounds = array<i64: 1, 128>}, {pipeline_mode = #tpu.pipeline_mode<synchronous>, transform_indices = @transform_3, window_bounds = array<i64: 1, 128>}, {pipeline_mode = #tpu.pipeline_mode<synchronous>, transform_indices = @transform_4, window_bounds = array<i64: 1, 128>}, {transform_indices = @transform_5, window_bounds = array<i64: 8, 128>}]} {
    %c0 = arith.constant 0 : index
    %c0_0 = arith.constant 0 : index
    %0 = vector.load %arg1[%c0, %c0_0] : memref<8x128xf32, #tpu.memory_space<vmem>>, vector<8x128xf32>
    %c0_1 = arith.constant 0 : index
    %c0_2 = arith.constant 0 : index
    %1 = vector.load %arg2[%c0_1, %c0_2] : memref<128x128xf32, #tpu.memory_space<vmem>>, vector<128x128xf32>
    %cst = arith.constant dense<0.000000e+00> : vector<8x128xf32>
    %2 = tpu.matmul %0, %1, %cst {dimension_numbers = #tpu.dot_dimension_numbers<[1], [0], [0], [1], [0, 0, 1, 1], [], []>} : vector<8x128xf32>, vector<128x128xf32>, vector<8x128xf32> -> vector<8x128xf32>
    %c0_3 = arith.constant 0 : index
    %c0_4 = arith.constant 0 : index
    %3 = vector.load %arg3[%c0_3, %c0_4] : memref<1x128xf32, #tpu.memory_space<vmem>>, vector<1x128xf32>
    %4 = vector.broadcast %3 : vector<1x128xf32> to vector<8x128xf32>
    %5 = arith.addf %2, %4 : vector<8x128xf32>
    %6 = arith.addf %5, %0 : vector<8x128xf32>
    %cst_5 = arith.constant dense<0.000000e+00> : vector<8xf32>
    %7 = vector.multi_reduction <add>, %6, %cst_5 [1] : vector<8x128xf32> to vector<8xf32>
    %8 = vector.shape_cast %7 : vector<8xf32> to vector<8x1xf32>
    %cst_6 = arith.constant 7.812500e-03 : f32
    %9 = vector.broadcast %cst_6 : f32 to vector<8x1xf32>
    %10 = arith.mulf %8, %9 : vector<8x1xf32>
    %11 = vector.broadcast %10 : vector<8x1xf32> to vector<8x128xf32>
    %12 = arith.subf %6, %11 : vector<8x128xf32>
    %13 = arith.mulf %12, %12 : vector<8x128xf32>
    %cst_7 = arith.constant dense<0.000000e+00> : vector<8xf32>
    %14 = vector.multi_reduction <add>, %13, %cst_7 [1] : vector<8x128xf32> to vector<8xf32>
    %15 = vector.shape_cast %14 : vector<8xf32> to vector<8x1xf32>
    %cst_8 = arith.constant 7.812500e-03 : f32
    %16 = vector.broadcast %cst_8 : f32 to vector<8x1xf32>
    %17 = arith.mulf %15, %16 : vector<8x1xf32>
    %cst_9 = arith.constant 9.99999997E-7 : f32
    %18 = vector.broadcast %cst_9 : f32 to vector<8x1xf32>
    %19 = arith.addf %17, %18 : vector<8x1xf32>
    %20 = math.rsqrt %19 : vector<8x1xf32>
    %21 = vector.broadcast %20 : vector<8x1xf32> to vector<8x128xf32>
    %22 = arith.mulf %12, %21 : vector<8x128xf32>
    %c0_10 = arith.constant 0 : index
    %c0_11 = arith.constant 0 : index
    %23 = vector.load %arg4[%c0_10, %c0_11] : memref<1x128xf32, #tpu.memory_space<vmem>>, vector<1x128xf32>
    %24 = vector.broadcast %23 : vector<1x128xf32> to vector<8x128xf32>
    %25 = arith.mulf %22, %24 : vector<8x128xf32>
    %c0_12 = arith.constant 0 : index
    %c0_13 = arith.constant 0 : index
    %26 = vector.load %arg5[%c0_12, %c0_13] : memref<1x128xf32, #tpu.memory_space<vmem>>, vector<1x128xf32>
    %27 = vector.broadcast %26 : vector<1x128xf32> to vector<8x128xf32>
    %28 = arith.addf %25, %27 : vector<8x128xf32>
    %c0_14 = arith.constant 0 : index
    %c0_15 = arith.constant 0 : index
    %29 = vector.load %arg6[%c0_14, %c0_15] : memref<8x128xf32, #tpu.memory_space<vmem>>, vector<8x128xf32>
    tpu.vector_store %arg6[%c0_14, %c0_15], %28 {strides = array<i32>} : memref<8x128xf32, #tpu.memory_space<vmem>>, vector<8x128xf32>,
    return
  }
  func.func @transform_0(%arg0: i32) -> (i32, i32) {
    %c0_i32 = arith.constant 0 : i32
    %c0_i32_0 = arith.constant 0 : i32
    return %arg0, %c0_i32 : i32, i32
  }
  func.func @transform_1(%arg0: i32) -> (i32, i32) {
    %c0_i32 = arith.constant 0 : i32
    %c0_i32_0 = arith.constant 0 : i32
    %c0_i32_1 = arith.constant 0 : i32
    return %c0_i32, %c0_i32_0 : i32, i32
  }
  func.func @transform_2(%arg0: i32) -> (i32, i32) {
    %c0_i32 = arith.constant 0 : i32
    %c0_i32_0 = arith.constant 0 : i32
    %c0_i32_1 = arith.constant 0 : i32
    return %c0_i32, %c0_i32_0 : i32, i32
  }
  func.func @transform_3(%arg0: i32) -> (i32, i32) {
    %c0_i32 = arith.constant 0 : i32
    %c0_i32_0 = arith.constant 0 : i32
    %c0_i32_1 = arith.constant 0 : i32
    return %c0_i32, %c0_i32_0 : i32, i32
  }
  func.func @transform_4(%arg0: i32) -> (i32, i32) {
    %c0_i32 = arith.constant 0 : i32
    %c0_i32_0 = arith.constant 0 : i32
    %c0_i32_1 = arith.constant 0 : i32
    return %c0_i32, %c0_i32_0 : i32, i32
  }
  func.func @transform_5(%arg0: i32) -> (i32, i32) {
    %c0_i32 = arith.constant 0 : i32
    %c0_i32_0 = arith.constant 0 : i32
    return %arg0, %c0_i32 : i32, i32
  }
}

</mosaic_0001>

<llo_original>
// kernel: residual_norm.1
$region0: #{residual_norm.1}
  #allocation0 [shape = 'u32[]', space=smem, size = 0x4, offset = 0x4, fixed_abs, tag = 'smem constant byte address 0x4 - core index']
  #allocation1 [shape = 'u32[72,128]{1,0:T(1,128)}', space=vmem, size = 0x9000, scoped, tag = 'internal scratch']
  %s0 = inlined_call_operand.hbm [shape: f32[16,128], index: 0, kind: input, shape index: {}]
  %s1 = inlined_call_operand.hbm [shape: f32[128,128], index: 1, kind: input, shape index: {}]
  %s2 = inlined_call_operand.vmem [shape: f32[1,128], index: 2, kind: input, shape index: {}]
  %s3 = inlined_call_operand.vmem [shape: f32[1,128], index: 3, kind: input, shape index: {}]
  %s4 = inlined_call_operand.vmem [shape: f32[1,128], index: 4, kind: input, shape index: {}]
  %s5 = inlined_call_operand.hbm [shape: f32[16,128], index: 5, kind: output, shape index: {}]
  %s6 = sld [smem:[#allocation0]]
  $region61: #{residual_norm.1} parent=0
    _
  %s8 = ssub.s32 1, %s6
  %s9 = scalar_select 0, %s8, %s6
  $region1: #{residual_norm.1} parent=0
    #allocation2 [shape = 'u8[8192]{0}', space=vmem, size = 0x2000, scoped, tag = 'input window, operand 0']
    #allocation3 [shape = 's32[2]{0}', space=sflag, size = 0x8, scoped, tag = 'scoped memory for residual_norm.1']
    #allocation4 [shape = 's32[2]{0}', space=sflag, size = 0x8, scoped, tag = 'scoped memory for residual_norm.1']
    #allocation5 [shape = 'u8[65536]{0}', space=vmem, size = 0x10000, scoped, tag = 'input window, operand 1, single buffered']
    #allocation6 [shape = 's32[1]{0}', space=sflag, size = 0x4, scoped, tag = 'scoped memory for residual_norm.1']
    #allocation7 [shape = 'u8[8192]{0}', space=vmem, size = 0x2000, scoped, tag = 'output window, operand 0']
    %10 = vsyncpa [#allocation3], 0
    %s11 = scalar_lea.sflag [#allocation3], 1
    %12 = vsyncpa %s11, 0
    %13 = vsyncpa [#allocation6], 0
    %14 = vsyncpa [#allocation4], 0
    %s15 = scalar_lea.sflag [#allocation4], 1
    %16 = vsyncpa %s15, 0
    loop: start=0, step=1, limit=4
    $region2: #{residual_norm.1} parent=1 // loop_pre_header
      _
    $region3: #{residual_norm.1} parent=1 // loop_header
      %s18 = sphi 0, %s22
      %p19 = scmp.ge.s32.totalorder %s18, 4
      %s28 = sphi 0, %s30
      %s31 = sphi 0, %s28
      %s32 = sphi 0, %s31
      %s48 = sphi 0, %s32
      %s52 = sphi 0, %s52
      %s54 = sphi 0, %s52
      %s55 = sphi 0, %s54
      %s69 = sphi 0, %s55
      %s73 = sphi 0, %s73
      %s75 = sphi 0, %s73
      %s76 = sphi 0, %s75
      %s90 = sphi 0, %s76
      %s94 = sphi 0, %s94
      %s96 = sphi 0, %s94
      %s97 = sphi 0, %s96
      %s111 = sphi 0, %s97
      %s115 = sphi 0, %s115
      %s117 = sphi 0, %s115
      %s118 = sphi 0, %s117
      %s132 = sphi 0, %s118
      %s138 = sphi 0, %s140
      %s141 = sphi 0, %s138
      %s142 = sphi 0, %s141
      %s158 = sphi 0, %s142
    $region4: #{residual_norm.1} parent=1 // loop_header_branch
      %21 = sbr.rel (%p19) target = $region8
    $region5: #{residual_norm.1} parent=1 // loop_body
      %s23 = ssub.s32 %s18, 1
      %s24 = ssub.s32 %s18, 2
      %s25 = sadd.s32 %s18, 1
      %s26 = ssub.s32 %s18, %s25
      %p27 = scmp.eq.s32.totalorder %s26, 0
      %s29 = sadd.s32 %s28, 1
      %s30 = scalar_select %p27, %s28, %s29
      %p33 = pneg %p27
      %p34 = scmp.eq.s32.totalorder %s18, 1
      %p35 = por %p33, %p34
      %p36 = scmp.ne.s32.totalorder %s28, %s31
      %p37 = scmp.eq.s32.totalorder %s18, 0
      %p38 = por %p36, %p37
      %p39 = scmp.ne.s32.totalorder %s28, %s31
      %p40 = scmp.eq.s32.totalorder %s23, 1
      %p41 = por %p39, %p40
      %p42 = scmp.ne.s32.totalorder %s31, %s32
      %p43 = scmp.eq.s32.totalorder %s23, 0
      %p44 = por %p42, %p43
      %p45 = scmp.ne.s32.totalorder %s31, %s32
      %p46 = scmp.eq.s32.totalorder %s24, 1
      %p47 = por %p45, %p46
      %p49 = scmp.ne.s32.totalorder %s32, %s48
      %p50 = scmp.eq.s32.totalorder %s24, 0
      %p51 = por %p49, %p50
      %s53 = sadd.s32 %s52, 1
      %p56 = scmp.eq.s32.totalorder %s18, 1
      %p57 = scmp.ne.s32.totalorder %s52, %s54
      %p58 = scmp.eq.s32.totalorder %s18, 0
      %p59 = por %p57, %p58
      %p60 = scmp.ne.s32.totalorder %s52, %s54
      %p61 = scmp.eq.s32.totalorder %s23, 1
      %p62 = por %p60, %p61
      %p63 = scmp.ne.s32.totalorder %s54, %s55
      %p64 = scmp.eq.s32.totalorder %s23, 0
      %p65 = por %p63, %p64
      %p66 = scmp.ne.s32.totalorder %s54, %s55
      %p67 = scmp.eq.s32.totalorder %s24, 1
      %p68 = por %p66, %p67
      %p70 = scmp.ne.s32.totalorder %s55, %s69
      %p71 = scmp.eq.s32.totalorder %s24, 0
      %p72 = por %p70, %p71
      %s74 = sadd.s32 %s73, 1
      %p77 = scmp.eq.s32.totalorder %s18, 1
      %p78 = scmp.ne.s32.totalorder %s73, %s75
      %p79 = scmp.eq.s32.totalorder %s18, 0
      %p80 = por %p78, %p79
      %p81 = scmp.ne.s32.totalorder %s73, %s75
      %p82 = scmp.eq.s32.totalorder %s23, 1
      %p83 = por %p81, %p82
      %p84 = scmp.ne.s32.totalorder %s75, %s76
      %p85 = scmp.eq.s32.totalorder %s23, 0
      %p86 = por %p84, %p85
      %p87 = scmp.ne.s32.totalorder %s75, %s76
      %p88 = scmp.eq.s32.totalorder %s24, 1
      %p89 = por %p87, %p88
      %p91 = scmp.ne.s32.totalorder %s76, %s90
      %p92 = scmp.eq.s32.totalorder %s24, 0
      %p93 = por %p91, %p92
      %s95 = sadd.s32 %s94, 1
      %p98 = scmp.eq.s32.totalorder %s18, 1
      %p99 = scmp.ne.s32.totalorder %s94, %s96
      %p100 = scmp.eq.s32.totalorder %s18, 0
      %p101 = por %p99, %p100
      %p102 = scmp.ne.s32.totalorder %s94, %s96
      %p103 = scmp.eq.s32.totalorder %s23, 1
      %p104 = por %p102, %p103
      %p105 = scmp.ne.s32.totalorder %s96, %s97
      %p106 = scmp.eq.s32.totalorder %s23, 0
      %p107 = por %p105, %p106
      %p108 = scmp.ne.s32.totalorder %s96, %s97
      %p109 = scmp.eq.s32.totalorder %s24, 1
      %p110 = por %p108, %p109
      %p112 = scmp.ne.s32.totalorder %s97, %s111
      %p113 = scmp.eq.s32.totalorder %s24, 0
      %p114 = por %p112, %p113
      %s116 = sadd.s32 %s115, 1
      %p119 = scmp.eq.s32.totalorder %s18, 1
      %p120 = scmp.ne.s32.totalorder %s115, %s117
      %p121 = scmp.eq.s32.totalorder %s18, 0
      %p122 = por %p120, %p121
      %p123 = scmp.ne.s32.totalorder %s115, %s117
      %p124 = scmp.eq.s32.totalorder %s23, 1
      %p125 = por %p123, %p124
      %p126 = scmp.ne.s32.totalorder %s117, %s118
      %p127 = scmp.eq.s32.totalorder %s23, 0
      %p128 = por %p126, %p127
      %p129 = scmp.ne.s32.totalorder %s117, %s118
      %p130 = scmp.eq.s32.totalorder %s24, 1
      %p131 = por %p129, %p130
      %p133 = scmp.ne.s32.totalorder %s118, %s132
      %p134 = scmp.eq.s32.totalorder %s24, 0
      %p135 = por %p133, %p134
      %s136 = ssub.s32 %s18, %s25
      %p137 = scmp.eq.s32.totalorder %s136, 0
      %s139 = sadd.s32 %s138, 1
      %s140 = scalar_select %p137, %s138, %s139
      %p143 = pneg %p137
      %p144 = scmp.eq.s32.totalorder %s18, 1
      %p145 = por %p143, %p144
      %p146 = scmp.ne.s32.totalorder %s138, %s141
      %p147 = scmp.eq.s32.totalorder %s18, 0
      %p148 = por %p146, %p147
      %p149 = scmp.ne.s32.totalorder %s138, %s141
      %p150 = scmp.eq.s32.totalorder %s23, 1
      %p151 = por %p149, %p150
      %p152 = scmp.ne.s32.totalorder %s141, %s142
      %p153 = scmp.eq.s32.totalorder %s23, 0
      %p154 = por %p152, %p153
      %p155 = scmp.ne.s32.totalorder %s141, %s142
      %p156 = scmp.eq.s32.totalorder %s24, 1
      %p157 = por %p155, %p156
      %p159 = scmp.ne.s32.totalorder %s142, %s158
      %p160 = scmp.eq.s32.totalorder %s24, 0
      %p161 = por %p159, %p160
      %p162 = scmp.le.s32.totalorder 1, %s18
      %p163 = scmp.lt.s32.totalorder %s18, 3
      %p164 = pnand %p162, %p163
      %p165 = pneg %p164
      // Predicated region
      $region9: #{residual_norm.1} parent=5 // pred_check
        _
      $region10: #{residual_norm.1} parent=5 // pred_check_branch
        %167 = sbr.rel (%p164) target = $region12
      $region11: #{residual_norm.1} parent=5 // pred_region
        %s168 = ssub.s32 %s18, 1
        // Predicated region
        $region13: #{residual_norm.1} parent=11 // pred_check
          %p169 = pneg %p65
        $region14: #{residual_norm.1} parent=11 // pred_check_branch
          %171 = sbr.rel (%p169) target = $region16
        $region15: #{residual_norm.1} parent=11 // pred_region
          %173 = vsyncadd [#allocation6], 0
          %s174 = sshll.u32 %s1, 4
          %s175 = int_to_ptr.hbm [resolvable:$true] %s174
          %s176 = sshll.u32 [#allocation5], 4
          %s177 = int_to_ptr.vmem [resolvable:$true] %s176
          %182 = dma.hbm_to_vmem [thread:$0]  %s175, 2048, %s177, [#allocation6], 128, 128, 8
        $region16: #{residual_norm.1} parent=11 // pred_fallthru
          _
        // Predicated region
        $region17: #{residual_norm.1} parent=11 // pred_check
          %p183 = pneg %p86
        $region18: #{residual_norm.1} parent=11 // pred_check_branch
          %185 = sbr.rel (%p183) target = $region20
        $region19: #{residual_norm.1} parent=11 // pred_region
          _
        $region20: #{residual_norm.1} parent=11 // pred_fallthru
          _
        // Predicated region
        $region21: #{residual_norm.1} parent=11 // pred_check
          %p186 = pneg %p107
        $region22: #{residual_norm.1} parent=11 // pred_check_branch
          %188 = sbr.rel (%p186) target = $region24
        $region23: #{residual_norm.1} parent=11 // pred_region
          _
        $region24: #{residual_norm.1} parent=11 // pred_fallthru
          _
        // Predicated region
        $region25: #{residual_norm.1} parent=11 // pred_check
          %p189 = pneg %p128
        $region26: #{residual_norm.1} parent=11 // pred_check_branch
          %191 = sbr.rel (%p189) target = $region28
        $region27: #{residual_norm.1} parent=11 // pred_region
          _
        $region28: #{residual_norm.1} parent=11 // pred_fallthru
          _
      $region12: #{residual_norm.1} parent=5 // pred_fallthru
        _
      %p192 = scmp.lt.s32.totalorder %s18, 2
      // Predicated region
      $region29: #{residual_norm.1} parent=5 // pred_check
        %p193 = pneg %p192
      $region30: #{residual_norm.1} parent=5 // pred_check_branch
        %195 = sbr.rel (%p193) target = $region32
      $region31: #{residual_norm.1} parent=5 // pred_region
        // Predicated region
        $region33: #{residual_norm.1} parent=31 // pred_check
          %p196 = pneg %p38
        $region34: #{residual_norm.1} parent=31 // pred_check_branch
          %198 = sbr.rel (%p196) target = $region36
        $region35: #{residual_norm.1} parent=31 // pred_region
          %s199 = sand.u32 %s28, 1
          %s200 = scalar_lea.sflag [#allocation3], %s199
          %s201 = sand.u32 %s28, 1
          %s202 = smul.addr %s201, 8
          %s203 = scalar_lea.vmem [#allocation2], %s202
          %205 = vsyncadd %s200, 0
          %s206 = smul.addr %s18, 8
          %s207 = scalar_lea.hbm %s0, %s206
          %s209 = sshll.u32 %s207, 4
          %s210 = int_to_ptr.hbm [resolvable:$true] %s209
          %s211 = sshll.u32 %s203, 4
          %s212 = int_to_ptr.vmem [resolvable:$true] %s211
          %214 = dma.hbm_to_vmem [thread:$0]  %s210, 128, %s212, %s200
        $region36: #{residual_norm.1} parent=31 // pred_fallthru
          _
      $region32: #{residual_norm.1} parent=5 // pred_fallthru
        _
      %p215 = scmp.le.s32.totalorder 1, %s18
      %p216 = scmp.lt.s32.totalorder %s18, 3
      %p217 = pnand %p215, %p216
      %p218 = pneg %p217
      // Predicated region
      $region37: #{residual_norm.1} parent=5 // pred_check
        _
      $region38: #{residual_norm.1} parent=5 // pred_check_branch
        %220 = sbr.rel (%p217) target = $region40
      $region39: #{residual_norm.1} parent=5 // pred_region
        %s221 = ssub.s32 %s18, 1
        %s222 = sand.u32 %s31, 1
        %s223 = scalar_lea.sflag [#allocation3], %s222
        %s224 = sand.u32 %s31, 1
        %s225 = smul.addr %s224, 8
        %s226 = scalar_lea.vmem [#allocation2], %s225
        // Predicated region
        $region41: #{residual_norm.1} parent=39 // pred_check
          %p227 = pneg %p44
        $region42: #{residual_norm.1} parent=39 // pred_check_branch
          %229 = sbr.rel (%p227) target = $region44
        $region43: #{residual_norm.1} parent=39 // pred_region
          %231 = dma.done %s223, 128
        $region44: #{residual_norm.1} parent=39 // pred_fallthru
          _
        // Predicated region
        $region45: #{residual_norm.1} parent=39 // pred_check
          %p232 = pneg %p65
        $region46: #{residual_norm.1} parent=39 // pred_check_branch
          %234 = sbr.rel (%p232) target = $region48
        $region47: #{residual_norm.1} parent=39 // pred_region
          %236 = dma.done [#allocation6], 2048
        $region48: #{residual_norm.1} parent=39 // pred_fallthru
          _
        %s237 = sand.u32 %s31, 1
        %s238 = scalar_lea.sflag [#allocation3], %s237
        %s239 = sand.u32 %s31, 1
        %s240 = smul.addr %s239, 8
        %s241 = scalar_lea.vmem [#allocation2], %s240
        %p242 = pneg %p44
        %p243 = pneg %p41
        %p244 = pneg %p65
        %p245 = pneg %p62
        %p246 = pneg %p86
        %p247 = pneg %p83
        %p248 = pneg %p107
        %p249 = pneg %p104
        %p250 = pneg %p128
        %p251 = pneg %p125
        %p252 = pneg %p154
        %p253 = pneg %p151
        %s254 = sand.u32 %s141, 1
        %s255 = scalar_lea.sflag [#allocation4], %s254
        %s256 = sand.u32 %s141, 1
        %s257 = smul.addr %s256, 8
        %s258 = scalar_lea.vmem [#allocation7], %s257
        %v259 = vld [vmem:[%s226] sm:$0xff]
        %v260 = vld [vmem:[#allocation5] sm:$0xff]
        %v261 = vld [vmem:[#allocation5 + $0x8] sm:$0xff]
        %v262 = vld [vmem:[#allocation5 + $0x10] sm:$0xff]
        %v263 = vld [vmem:[#allocation5 + $0x18] sm:$0xff]
        %v264 = vld [vmem:[#allocation5 + $0x20] sm:$0xff]
        %v265 = vld [vmem:[#allocation5 + $0x28] sm:$0xff]
        %v266 = vld [vmem:[#allocation5 + $0x30] sm:$0xff]
        %v267 = vld [vmem:[#allocation5 + $0x38] sm:$0xff]
        %v268 = vld [vmem:[#allocation5 + $0x40] sm:$0xff]
        %v269 = vld [vmem:[#allocation5 + $0x48] sm:$0xff]
        %v270 = vld [vmem:[#allocation5 + $0x50] sm:$0xff]
        %v271 = vld [vmem:[#allocation5 + $0x58] sm:$0xff]
        %v272 = vld [vmem:[#allocation5 + $0x60] sm:$0xff]
        %v273 = vld [vmem:[#allocation5 + $0x68] sm:$0xff]
        %v274 = vld [vmem:[#allocation5 + $0x70] sm:$0xff]
        %v275 = vld [vmem:[#allocation5 + $0x78] sm:$0xff]
        %v276 = vld [vmem:[%s2] sm:$0x1]
        %v278 = vperm.slane %v276, 0
        %280 = vmatpush.msra.mxu0 %v275
        %281 = vmatpush.msra.mxu0 %v274
        %282 = vmatpush.msra.mxu0 %v273
        %283 = vmatpush.msra.mxu0 %v272
        %284 = vmatpush.msra.mxu0 %v271
        %285 = vmatpush.msra.mxu0 %v270
        %286 = vmatpush.msra.mxu0 %v269
        %287 = vmatpush.msra.mxu0 %v268
        %288 = vmatpush.msra.mxu0 %v267
        %289 = vmatpush.msra.mxu0 %v266
        %290 = vmatpush.msra.mxu0 %v265
        %291 = vmatpush.msra.mxu0 %v264
        %292 = vmatpush.msra.mxu0 %v263
        %293 = vmatpush.msra.mxu0 %v262
        %294 = vmatpush.msra.mxu0 %v261
        %295 = vmatpush.msra.mxu0 %v260
        %296 = vmatmul.f32.gmra.mxu0 %v259
        %v297 = vpop.f32.mrf.mxu0
        %v298 = vadd.f32 %v278, %v297
        %299 = vdwg.mxu0
        %v300 = vadd.f32 %v298, %v259
        %301 = vadd.xlane.f32.xlu0 %v300
        %v302 = vpop.xlane.xlu0 %301
        %v303 = vmul.f32 %v302, 0.0078125
        %v304 = vsub.f32 %v300, %v303
        %v305 = vmul.f32 %v304, %v304
        %306 = vadd.xlane.f32.xlu0 %v305
        %v307 = vpop.xlane.xlu0 %306
        %v308 = vmul.f32 %v307, 0.0078125
        %v309 = vadd.f32 %v308, 1e-06
        %v310 = vrsqrt.pop %v309
        %v311 = vmul.f32 %v310, %v309
        %v312 = vmul.f32 %v311, %v310
        %v313 = vmul.f32 0.5, %v312
        %v314 = vsub.f32 1.5, %v313
        %v315 = vmul.f32 %v310, %v314
        %vm316 = vweird.f32 %v309
        %vm317 = vweird.f32 %v310
        %vm318 = vmor %vm316, %vm317
        %v319 = vsel %vm318, %v310, %v315
        %v320 = vmul.f32 %v304, %v319
        %v321 = vld [vmem:[%s3] sm:$0x1]
        %v323 = vperm.slane %v321, 0
        %v325 = vmul.f32 %v320, %v323
        %v326 = vld [vmem:[%s4] sm:$0x1]
        %v328 = vperm.slane %v326, 0
        %v330 = vadd.f32 %v325, %v328
        %331 = vst [vmem:[%s258] sm:$0xff] %v330
        %s332 = sand.u32 %s141, 1
        %s333 = scalar_lea.sflag [#allocation4], %s332
        %s334 = sand.u32 %s141, 1
        %s335 = smul.addr %s334, 8
        %s336 = scalar_lea.vmem [#allocation7], %s335
        // Predicated region
        $region49: #{residual_norm.1} parent=39 // pred_check
          %p337 = pneg %p151
        $region50: #{residual_norm.1} parent=39 // pred_check_branch
          %339 = sbr.rel (%p337) target = $region52
        $region51: #{residual_norm.1} parent=39 // pred_region
          %341 = vsyncadd %s333, 0
          %s342 = smul.addr %s23, 8
          %s343 = scalar_lea.hbm %s5, %s342
          %s345 = sshll.u32 %s336, 4
          %s346 = int_to_ptr.vmem [resolvable:$true] %s345
          %s347 = sshll.u32 %s343, 4
          %s348 = int_to_ptr.hbm [resolvable:$true] %s347
          %350 = dma.vmem_to_hbm [thread:$0]  %s346, 128, %s348, %s333
        $region52: #{residual_norm.1} parent=39 // pred_fallthru
          _
      $region40: #{residual_norm.1} parent=5 // pred_fallthru
        _
      %p351 = scmp.le.s32.totalorder 2, %s18
      // Predicated region
      $region53: #{residual_norm.1} parent=5 // pred_check
        %p352 = pneg %p351
      $region54: #{residual_norm.1} parent=5 // pred_check_branch
        %354 = sbr.rel (%p352) target = $region56
      $region55: #{residual_norm.1} parent=5 // pred_region
        %s355 = ssub.s32 %s18, 2
        // Predicated region
        $region57: #{residual_norm.1} parent=55 // pred_check
          %p356 = pneg %p157
        $region58: #{residual_norm.1} parent=55 // pred_check_branch
          %358 = sbr.rel (%p356) target = $region60
        $region59: #{residual_norm.1} parent=55 // pred_region
          %s359 = sand.u32 %s142, 1
          %s360 = scalar_lea.sflag [#allocation4], %s359
          %s361 = sand.u32 %s142, 1
          %s362 = smul.addr %s361, 8
          %s363 = scalar_lea.vmem [#allocation7], %s362
          %365 = dma.done %s360, 128
        $region60: #{residual_norm.1} parent=55 // pred_fallthru
          _
      $region56: #{residual_norm.1} parent=5 // pred_fallthru
        _
    $region6: #{residual_norm.1} parent=1 // loop_footer
      %s22 = sadd.s32 1, %s18
    $region7: #{residual_norm.1} parent=1 // loop_footer_branch
      %17 = sbr.rel target = $region3
    $region8: #{residual_norm.1} parent=1 // loop_exit
      _
    %366 = vsyncpa [#allocation3], 1
    %s367 = scalar_lea.sflag [#allocation3], 1
    %368 = vsyncpa %s367, 1
    %369 = vsyncpa [#allocation6], 1
    %370 = vsyncpa [#allocation4], 1
    %s371 = scalar_lea.sflag [#allocation4], 1
    %372 = vsyncpa %s371, 1

</llo_original>
